<compile_context>
chip_gen: v7x
topology: tpu7x:2x2x1
jax: 0.10.0
libtpu: 0.0.40
codegen_flags: <defaults>
</compile_context>

<pallas_src>
import functools

import jax
import jax.numpy as jnp
from jax import lax
from jax.experimental import pallas as pl
from jax.experimental.pallas import tpu as pltpu
import numpy as np


def _round_up(x, m):
    return ((x + m - 1) // m) * m


def _pick_s_tile(s, k, cin_p, batch, itemsize=2, budget=1 << 20):
    """Largest multiple of 128 dividing S (lane-dense, unmasked vld/vst) that
    keeps one grouped input block (K * Cin_p * tS bytes) under `budget`.
    Budget of 1 MiB leaves room for 2x double-buffered input blocks plus the
    (C, tS) f32 intermediates and output blocks — well under v5e's 16 MiB
    scoped default and v7x's 64 MiB physical VMEM.  Falls back to the full
    extent when S < 128 or has no multiple-of-128 divisor (small-shape path)."""
    if s % 128 != 0:
        return s
    cap = max(128, budget // max(1, k * cin_p * itemsize))
    best = 128
    t = 256
    while t <= min(s, cap):
        if s % t == 0:
            best = t
        t += 128
    # Expose >= 2 grid iterations so v7x's second TensorCore has work.
    while batch * (s // best) < 2 and best % 256 == 0:
        best //= 2
    return best


# ----------------------------------------------------------------------------
# Pallas kernel: fused shared-MLP (2x 1x1 conv folded with eval-mode BN) + ReLU
# followed by a running max over the neighbor (K) axis.
#   x_ref  : (1, K, Cin_p, tS) bf16   grouped features, points in lanes
#   w1_ref : (C1, Cin_p)       bf16   conv1 weight (out, in) with BN1 scale folded
#   sh1_ref: (C1, 1)           f32    conv1 bias + BN1 shift
#   w2_ref : (C2, C1)          bf16   conv2 weight with BN2 scale folded
#   sh2_ref: (C2, 1)           f32
#   o_ref  : (1, C2, tS)       f32    max over the K neighbor axis
# ----------------------------------------------------------------------------
def _sa_mlp_kernel(x_ref, w1_ref, sh1_ref, w2_ref, sh2_ref, o_ref):
    k = x_ref.shape[1]
    c2, ts = o_ref.shape[1], o_ref.shape[2]

    w1 = w1_ref[...]
    sh1 = sh1_ref[...]
    w2 = w2_ref[...]
    sh2 = sh2_ref[...]

    acc = jnp.zeros((c2, ts), jnp.float32)
    # Static per-neighbor loop: each step is two small (C, C)@(C, tS) MXU
    # matmuls (contraction = real channel count, N = lane-dense S tile) plus a
    # VPU epilogue; ReLU outputs are >= 0 so a zero-initialized running max is
    # exact.  K is small (typ. 4-64), so full unroll is fine.
    for kk in range(k):
        x = x_ref[0, kk]                                        # (Cin_p, tS)
        h = jnp.dot(w1, x, preferred_element_type=jnp.float32)  # (C1, tS) f32
        h = jnp.maximum(h + sh1, 0.0)
        h = jnp.dot(w2, h.astype(w2.dtype),
                    preferred_element_type=jnp.float32)         # (C2, tS) f32
        h = jnp.maximum(h + sh2, 0.0)
        acc = jnp.maximum(acc, h)
    o_ref[0] = acc


def sa_mlp_maxpool(grouped, w1, sh1, w2, sh2):
    """grouped: [B, K, Cin_p, S] bf16 -> [B, C2, S] f32."""
    B, K, Cp, S = grouped.shape
    C1 = w1.shape[0]
    C2 = w2.shape[0]
    ts = _pick_s_tile(S, K, Cp, B, itemsize=grouped.dtype.itemsize)
    grid = (B, S // ts)

    flops = 2 * B * S * K * (Cp * C1 + C1 * C2)
    bytes_accessed = (grouped.size * grouped.dtype.itemsize
                      + (w1.size + w2.size) * 2
                      + (sh1.size + sh2.size) * 4
                      + B * C2 * S * 4)

    return pl.pallas_call(
        _sa_mlp_kernel,
        out_shape=jax.ShapeDtypeStruct((B, C2, S), jnp.float32),
        grid_spec=pltpu.PrefetchScalarGridSpec(
            num_scalar_prefetch=0,
            grid=grid,
            in_specs=[
                pl.BlockSpec((1, K, Cp, ts), lambda b, s: (b, 0, 0, s)),
                pl.BlockSpec((C1, Cp), lambda b, s: (0, 0)),
                pl.BlockSpec((C1, 1), lambda b, s: (0, 0)),
                pl.BlockSpec((C2, C1), lambda b, s: (0, 0)),
                pl.BlockSpec((C2, 1), lambda b, s: (0, 0)),
            ],
            out_specs=pl.BlockSpec((1, C2, ts), lambda b, s: (b, 0, s)),
        ),
        compiler_params=pltpu.CompilerParams(
            dimension_semantics=("parallel", "parallel"),
            vmem_limit_bytes=32 * 1024 * 1024),
        cost_estimate=pl.CostEstimate(
            flops=flops, transcendentals=0, bytes_accessed=bytes_accessed),
    )(grouped, w1, sh1, w2, sh2)


# ----------------------------------------------------------------------------
# Plain-JAX glue reproducing sample_and_group(knn=True) from pointnet_util.py,
# emitting grouped features directly in the kernel's channel-first layout
# [B, K, Cin, S] (S contiguous / lane-dense).
# ----------------------------------------------------------------------------
def index_points(points, idx):
    """points: [B, N, C]; idx: [B, ...] -> [B, ..., C]."""
    return jax.vmap(lambda p, i: p[i])(points, idx)


def square_distance(src, dst):
    """src: [B, M, 3], dst: [B, N, 3] -> [B, M, N]."""
    diff = src[:, :, None, :] - dst[:, None, :, :]
    return jnp.sum(diff * diff, axis=-1)


def farthest_point_sample(xyz, npoint):
    """xyz: [B, N, 3] -> [B, npoint] int32 indices.
    TODO(synk): PyTorch seeds FPS with a random start index; we start at 0 for
    determinism."""
    B, N, _ = xyz.shape

    def body(i, state):
        centroids, distance, farthest = state
        centroids = centroids.at[:, i].set(farthest)
        centroid = jax.vmap(lambda p, j: p[j])(xyz, farthest)[:, None, :]
        dist = jnp.sum((xyz - centroid) ** 2, axis=-1)
        distance = jnp.minimum(distance, dist)
        farthest = jnp.argmax(distance, axis=-1).astype(jnp.int32)
        return centroids, distance, farthest

    init = (jnp.zeros((B, npoint), jnp.int32),
            jnp.full((B, N), 1e10, jnp.float32),
            jnp.zeros((B,), jnp.int32))
    centroids, _, _ = lax.fori_loop(0, npoint, body, init)
    return centroids


def group_features(xyz, points, npoint, nsample):
    """FPS + kNN grouping -> (new_xyz [B,S,3], grouped [B,K,Cin,S] f32)."""
    fps_idx = farthest_point_sample(xyz, npoint)                 # [B, S]
    new_xyz = index_points(xyz, fps_idx)                         # [B, S, 3]
    # kNN via top_k on negative squared distance (O(N*k), not a full argsort).
    _, idx = lax.top_k(-square_distance(new_xyz, xyz), nsample)  # [B, S, K]

    def gather_cfirst(feats, ids):
        # feats: [N, C], ids: [S, K] -> [K, C, S]
        return jnp.transpose(feats[ids], (1, 2, 0))

    grouped_xyz = jax.vmap(gather_cfirst)(xyz, idx)              # [B, K, 3, S]
    center = jnp.transpose(new_xyz, (0, 2, 1))[:, None]          # [B, 1, 3, S]
    grouped_xyz = grouped_xyz - center                           # relative xyz
    grouped_pts = jax.vmap(gather_cfirst)(points, idx)           # [B, K, D, S]
    grouped = jnp.concatenate([grouped_xyz, grouped_pts], axis=2)
    return new_xyz, grouped                                      # [B, K, Cin, S]


def pad_params(params, cin_p):
    """Zero-pad conv1's input dim to the bf16-sublane-packed width and cast
    matmul weights to bf16.  Padded input channels carry zero weight, so the
    zero-padded grouped rows never contribute."""
    c1, cin = params["w1"].shape
    c2 = params["w2"].shape[0]
    w1 = jnp.zeros((c1, cin_p), jnp.bfloat16)
    w1 = w1.at[:, :cin].set(params["w1"].astype(jnp.bfloat16))
    w2 = params["w2"].astype(jnp.bfloat16)
    sh1 = params["sh1"].reshape(c1, 1).astype(jnp.float32)
    sh2 = params["sh2"].reshape(c2, 1).astype(jnp.float32)
    return w1, sh1, w2, sh2


@functools.partial(jax.jit, static_argnames=("npoint", "nsample"))
def transition_down(xyz, points, params, *, npoint, nsample):
    """xyz: [B, N, 3]; points: [B, N, D] ->
       (new_xyz [B, npoint, 3], new_points [B, npoint, C2])."""
    new_xyz, grouped = group_features(xyz, points, npoint, nsample)
    cin = grouped.shape[2]
    cin_p = _round_up(cin, 16)      # bf16 packs 16 rows per sublane tile
    grouped = jnp.pad(grouped, ((0, 0), (0, 0), (0, cin_p - cin), (0, 0)))
    # TODO(synk): bf16 activations lose a few bits vs PyTorch f32 convs.
    grouped = grouped.astype(jnp.bfloat16)
    w1, sh1, w2, sh2 = pad_params(params, cin_p)
    out = sa_mlp_maxpool(grouped, w1, sh1, w2, sh2)   # [B, C2, S] f32
    return new_xyz, jnp.transpose(out, (0, 2, 1))     # [B, S, C2]


# ----------------------------------------------------------------------------
# Deterministic synthetic parameters (Conv2d 1x1 + BatchNorm2d, eval mode) with
# the BN scale pre-folded into the (out, in) conv weights.
# TODO(synk): BatchNorm uses eval-mode running stats (mean=0, var=1); PyTorch
# train-mode batch statistics are not modeled.
# ----------------------------------------------------------------------------
def make_params(key, cin, c1, c2, eps=1e-5):
    ks = jax.random.split(key, 8)
    w1 = 0.1 * jax.random.normal(ks[0], (c1, cin), jnp.float32)
    b1 = 0.1 * jax.random.normal(ks[1], (c1,), jnp.float32)
    g1 = 1.0 + 0.1 * jax.random.normal(ks[2], (c1,), jnp.float32)
    be1 = 0.1 * jax.random.normal(ks[3], (c1,), jnp.float32)
    w2 = 0.1 * jax.random.normal(ks[4], (c2, c1), jnp.float32)
    b2 = 0.1 * jax.random.normal(ks[5], (c2,), jnp.float32)
    g2 = 1.0 + 0.1 * jax.random.normal(ks[6], (c2,), jnp.float32)
    be2 = 0.1 * jax.random.normal(ks[7], (c2,), jnp.float32)
    mean1, var1 = jnp.zeros((c1,), jnp.float32), jnp.ones((c1,), jnp.float32)
    mean2, var2 = jnp.zeros((c2,), jnp.float32), jnp.ones((c2,), jnp.float32)
    s1 = g1 / jnp.sqrt(var1 + eps)
    s2 = g2 / jnp.sqrt(var2 + eps)
    # Fold BN scale into the weights; keep only a per-channel shift.
    return dict(w1=w1 * s1[:, None], sh1=(b1 - mean1) * s1 + be1,
                w2=w2 * s2[:, None], sh2=(b2 - mean2) * s2 + be2)


def reference_mlp_maxpool(grouped, w1, sh1, w2, sh2):
    """Pure-JAX reference on the same bf16 inputs / folded weights.
    grouped: [B, K, Cin_p, S] -> [B, C2, S] f32."""
    h = jnp.einsum("oc,bkcs->bkos", w1, grouped,
                   preferred_element_type=jnp.float32)
    h = jnp.maximum(h + sh1, 0.0)
    h = jnp.einsum("oc,bkcs->bkos", w2, h.astype(jnp.bfloat16),
                   preferred_element_type=jnp.float32)
    h = jnp.maximum(h + sh2, 0.0)
    return jnp.max(h, axis=1)


if __name__ == "__main__":
    key = jax.random.PRNGKey(0)
    k_xyz, k_pts, k_par = jax.random.split(key, 3)

    # TransitionDown(k=npoint, nneighbor, channels=[D+3, 32, 32])
    B, N, D = 2, 16, 16
    npoint, nneighbor = 8, 4
    Cin, C1, C2 = D + 3, 32, 32

    xyz = jax.random.normal(k_xyz, (B, N, 3), jnp.float32)
    points = jax.random.normal(k_pts, (B, N, D), jnp.float32)
    params = make_params(k_par, Cin, C1, C2)

    new_xyz, new_feats = transition_down(xyz, points, params,
                                         npoint=npoint, nsample=nneighbor)
    jax.block_until_ready((new_xyz, new_feats))

    assert new_xyz.shape == (B, npoint, 3)
    assert new_feats.shape == (B, npoint, C2)

    # Cross-check the Pallas hot path against a pure-JAX reference built from
    # the identical bf16 inputs / folded+padded weights.
    _, grouped = group_features(xyz, points, npoint, nneighbor)
    cin_p = _round_up(Cin, 16)
    g_p = jnp.pad(grouped, ((0, 0), (0, 0), (0, cin_p - Cin),
                            (0, 0))).astype(jnp.bfloat16)
    w1, sh1, w2, sh2 = pad_params(params, cin_p)
    ref = reference_mlp_maxpool(g_p, w1, sh1, w2, sh2)        # [B, C2, S]
    ref = jnp.transpose(ref, (0, 2, 1))                       # [B, S, C2]
    np.testing.assert_allclose(np.asarray(new_feats), np.asarray(ref),
                               rtol=1e-2, atol=1e-2)

    print("KERNEL_OK")
</pallas_src>

<mosaic_0001>
module attributes {stable_mosaic.version = 11 : i64} {
  func.func @_sa_mlp_kernel(%arg0: i32, %arg1: i32, %arg2: memref<1x4x32x8xbf16, #tpu.memory_space<vmem>>, %arg3: memref<32x32xbf16, #tpu.memory_space<vmem>>, %arg4: memref<32x1xf32, #tpu.memory_space<vmem>>, %arg5: memref<32x32xbf16, #tpu.memory_space<vmem>>, %arg6: memref<32x1xf32, #tpu.memory_space<vmem>>, %arg7: memref<1x32x8xf32, #tpu.memory_space<vmem>>) attributes {dimension_semantics = [#tpu.dimension_semantics<parallel>, #tpu.dimension_semantics<parallel>], iteration_bounds = array<i64: 2, 1>, scalar_prefetch = 0 : i64, scratch_operands = 0 : i64, tpu.core_type = #tpu.core_type<tc>, window_params = [{transform_indices = @transform_0, window_bounds = array<i64: 1, 4, 32, 8>}, {pipeline_mode = #tpu.pipeline_mode<synchronous>, transform_indices = @transform_1, window_bounds = array<i64: 32, 32>}, {pipeline_mode = #tpu.pipeline_mode<synchronous>, transform_indices = @transform_2, window_bounds = array<i64: 32, 1>}, {pipeline_mode = #tpu.pipeline_mode<synchronous>, transform_indices = @transform_3, window_bounds = array<i64: 32, 32>}, {pipeline_mode = #tpu.pipeline_mode<synchronous>, transform_indices = @transform_4, window_bounds = array<i64: 32, 1>}, {transform_indices = @transform_5, window_bounds = array<i64: 1, 32, 8>}]} {
    %c0 = arith.constant 0 : index
    %c0_0 = arith.constant 0 : index
    %0 = vector.load %arg3[%c0, %c0_0] : memref<32x32xbf16, #tpu.memory_space<vmem>>, vector<32x32xbf16>
    %c0_1 = arith.constant 0 : index
    %c0_2 = arith.constant 0 : index
    %1 = vector.load %arg4[%c0_1, %c0_2] : memref<32x1xf32, #tpu.memory_space<vmem>>, vector<32x1xf32>
    %c0_3 = arith.constant 0 : index
    %c0_4 = arith.constant 0 : index
    %2 = vector.load %arg5[%c0_3, %c0_4] : memref<32x32xbf16, #tpu.memory_space<vmem>>, vector<32x32xbf16>
    %c0_5 = arith.constant 0 : index
    %c0_6 = arith.constant 0 : index
    %3 = vector.load %arg6[%c0_5, %c0_6] : memref<32x1xf32, #tpu.memory_space<vmem>>, vector<32x1xf32>
    %cst = arith.constant 0.000000e+00 : f32
    %4 = vector.broadcast %cst : f32 to vector<32x8xf32>
    %c0_7 = arith.constant 0 : index
    %c0_8 = arith.constant 0 : index
    %c0_9 = arith.constant 0 : index
    %c0_10 = arith.constant 0 : index
    %5 = vector.load %arg2[%c0_7, %c0_8, %c0_9, %c0_10] : memref<1x4x32x8xbf16, #tpu.memory_space<vmem>>, vector<1x1x32x8xbf16>
    %6 = vector.shape_cast %5 : vector<1x1x32x8xbf16> to vector<32x8xbf16>
    %cst_11 = arith.constant dense<0.000000e+00> : vector<32x8xf32>
    %7 = tpu.matmul %0, %6, %cst_11 {dimension_numbers = #tpu.dot_dimension_numbers<[1], [0], [0], [1], [0, 0, 1, 1], [], []>} : vector<32x32xbf16>, vector<32x8xbf16>, vector<32x8xf32> -> vector<32x8xf32>
    %8 = vector.broadcast %1 : vector<32x1xf32> to vector<32x8xf32>
    %9 = arith.addf %7, %8 : vector<32x8xf32>
    %cst_12 = arith.constant 0.000000e+00 : f32
    %10 = vector.broadcast %cst_12 : f32 to vector<32x8xf32>
    %11 = arith.maximumf %9, %10 : vector<32x8xf32>
    %12 = arith.truncf %11 : vector<32x8xf32> to vector<32x8xbf16>
    %cst_13 = arith.constant dense<0.000000e+00> : vector<32x8xf32>
    %13 = tpu.matmul %2, %12, %cst_13 {dimension_numbers = #tpu.dot_dimension_numbers<[1], [0], [0], [1], [0, 0, 1, 1], [], []>} : vector<32x32xbf16>, vector<32x8xbf16>, vector<32x8xf32> -> vector<32x8xf32>
    %14 = vector.broadcast %3 : vector<32x1xf32> to vector<32x8xf32>
    %15 = arith.addf %13, %14 : vector<32x8xf32>
    %cst_14 = arith.constant 0.000000e+00 : f32
    %16 = vector.broadcast %cst_14 : f32 to vector<32x8xf32>
    %17 = arith.maximumf %15, %16 : vector<32x8xf32>
    %18 = arith.maximumf %4, %17 : vector<32x8xf32>
    %c0_15 = arith.constant 0 : index
    %c1 = arith.constant 1 : index
    %c0_16 = arith.constant 0 : index
    %c0_17 = arith.constant 0 : index
    %19 = vector.load %arg2[%c0_15, %c1, %c0_16, %c0_17] : memref<1x4x32x8xbf16, #tpu.memory_space<vmem>>, vector<1x1x32x8xbf16>
    %20 = vector.shape_cast %19 : vector<1x1x32x8xbf16> to vector<32x8xbf16>
    %cst_18 = arith.constant dense<0.000000e+00> : vector<32x8xf32>
    %21 = tpu.matmul %0, %20, %cst_18 {dimension_numbers = #tpu.dot_dimension_numbers<[1], [0], [0], [1], [0, 0, 1, 1], [], []>} : vector<32x32xbf16>, vector<32x8xbf16>, vector<32x8xf32> -> vector<32x8xf32>
    %22 = vector.broadcast %1 : vector<32x1xf32> to vector<32x8xf32>
    %23 = arith.addf %21, %22 : vector<32x8xf32>
    %cst_19 = arith.constant 0.000000e+00 : f32
    %24 = vector.broadcast %cst_19 : f32 to vector<32x8xf32>
    %25 = arith.maximumf %23, %24 : vector<32x8xf32>
    %26 = arith.truncf %25 : vector<32x8xf32> to vector<32x8xbf16>
    %cst_20 = arith.constant dense<0.000000e+00> : vector<32x8xf32>
    %27 = tpu.matmul %2, %26, %cst_20 {dimension_numbers = #tpu.dot_dimension_numbers<[1], [0], [0], [1], [0, 0, 1, 1], [], []>} : vector<32x32xbf16>, vector<32x8xbf16>, vector<32x8xf32> -> vector<32x8xf32>
    %28 = vector.broadcast %3 : vector<32x1xf32> to vector<32x8xf32>
    %29 = arith.addf %27, %28 : vector<32x8xf32>
    %cst_21 = arith.constant 0.000000e+00 : f32
    %30 = vector.broadcast %cst_21 : f32 to vector<32x8xf32>
    %31 = arith.maximumf %29, %30 : vector<32x8xf32>
    %32 = arith.maximumf %18, %31 : vector<32x8xf32>
    %c0_22 = arith.constant 0 : index
    %c2 = arith.constant 2 : index
    %c0_23 = arith.constant 0 : index
    %c0_24 = arith.constant 0 : index
    %33 = vector.load %arg2[%c0_22, %c2, %c0_23, %c0_24] : memref<1x4x32x8xbf16, #tpu.memory_space<vmem>>, vector<1x1x32x8xbf16>
    %34 = vector.shape_cast %33 : vector<1x1x32x8xbf16> to vector<32x8xbf16>
    %cst_25 = arith.constant dense<0.000000e+00> : vector<32x8xf32>
    %35 = tpu.matmul %0, %34, %cst_25 {dimension_numbers = #tpu.dot_dimension_numbers<[1], [0], [0], [1], [0, 0, 1, 1], [], []>} : vector<32x32xbf16>, vector<32x8xbf16>, vector<32x8xf32> -> vector<32x8xf32>
    %36 = vector.broadcast %1 : vector<32x1xf32> to vector<32x8xf32>
    %37 = arith.addf %35, %36 : vector<32x8xf32>
    %cst_26 = arith.constant 0.000000e+00 : f32
    %38 = vector.broadcast %cst_26 : f32 to vector<32x8xf32>
    %39 = arith.maximumf %37, %38 : vector<32x8xf32>
    %40 = arith.truncf %39 : vector<32x8xf32> to vector<32x8xbf16>
    %cst_27 = arith.constant dense<0.000000e+00> : vector<32x8xf32>
    %41 = tpu.matmul %2, %40, %cst_27 {dimension_numbers = #tpu.dot_dimension_numbers<[1], [0], [0], [1], [0, 0, 1, 1], [], []>} : vector<32x32xbf16>, vector<32x8xbf16>, vector<32x8xf32> -> vector<32x8xf32>
    %42 = vector.broadcast %3 : vector<32x1xf32> to vector<32x8xf32>
    %43 = arith.addf %41, %42 : vector<32x8xf32>
    %cst_28 = arith.constant 0.000000e+00 : f32
    %44 = vector.broadcast %cst_28 : f32 to vector<32x8xf32>
    %45 = arith.maximumf %43, %44 : vector<32x8xf32>
    %46 = arith.maximumf %32, %45 : vector<32x8xf32>
    %c0_29 = arith.constant 0 : index
    %c3 = arith.constant 3 : index
    %c0_30 = arith.constant 0 : index
    %c0_31 = arith.constant 0 : index
    %47 = vector.load %arg2[%c0_29, %c3, %c0_30, %c0_31] : memref<1x4x32x8xbf16, #tpu.memory_space<vmem>>, vector<1x1x32x8xbf16>
    %48 = vector.shape_cast %47 : vector<1x1x32x8xbf16> to vector<32x8xbf16>
    %cst_32 = arith.constant dense<0.000000e+00> : vector<32x8xf32>
    %49 = tpu.matmul %0, %48, %cst_32 {dimension_numbers = #tpu.dot_dimension_numbers<[1], [0], [0], [1], [0, 0, 1, 1], [], []>} : vector<32x32xbf16>, vector<32x8xbf16>, vector<32x8xf32> -> vector<32x8xf32>
    %50 = vector.broadcast %1 : vector<32x1xf32> to vector<32x8xf32>
    %51 = arith.addf %49, %50 : vector<32x8xf32>
    %cst_33 = arith.constant 0.000000e+00 : f32
    %52 = vector.broadcast %cst_33 : f32 to vector<32x8xf32>
    %53 = arith.maximumf %51, %52 : vector<32x8xf32>
    %54 = arith.truncf %53 : vector<32x8xf32> to vector<32x8xbf16>
    %cst_34 = arith.constant dense<0.000000e+00> : vector<32x8xf32>
    %55 = tpu.matmul %2, %54, %cst_34 {dimension_numbers = #tpu.dot_dimension_numbers<[1], [0], [0], [1], [0, 0, 1, 1], [], []>} : vector<32x32xbf16>, vector<32x8xbf16>, vector<32x8xf32> -> vector<32x8xf32>
    %56 = vector.broadcast %3 : vector<32x1xf32> to vector<32x8xf32>
    %57 = arith.addf %55, %56 : vector<32x8xf32>
    %cst_35 = arith.constant 0.000000e+00 : f32
    %58 = vector.broadcast %cst_35 : f32 to vector<32x8xf32>
    %59 = arith.maximumf %57, %58 : vector<32x8xf32>
    %60 = arith.maximumf %46, %59 : vector<32x8xf32>
    %c0_36 = arith.constant 0 : index
    %c0_37 = arith.constant 0 : index
    %c0_38 = arith.constant 0 : index
    %61 = vector.load %arg7[%c0_36, %c0_37, %c0_38] : memref<1x32x8xf32, #tpu.memory_space<vmem>>, vector<1x32x8xf32>
    %62 = vector.shape_cast %61 : vector<1x32x8xf32> to vector<32x8xf32>
    %63 = vector.shape_cast %60 : vector<32x8xf32> to vector<1x32x8xf32>
    tpu.vector_store %arg7[%c0_36, %c0_37, %c0_38], %63 {strides = array<i32>} : memref<1x32x8xf32, #tpu.memory_space<vmem>>, vector<1x32x8xf32>,
    return
  }
  func.func @transform_0(%arg0: i32, %arg1: i32) -> (i32, i32, i32, i32) {
    %c0_i32 = arith.constant 0 : i32
    %c0_i32_0 = arith.constant 0 : i32
    %c0_i32_1 = arith.constant 0 : i32
    return %arg0, %c0_i32, %c0_i32_0, %arg1 : i32, i32, i32, i32
  }
  func.func @transform_1(%arg0: i32, %arg1: i32) -> (i32, i32) {
    %c0_i32 = arith.constant 0 : i32
    %c0_i32_0 = arith.constant 0 : i32
    %c0_i32_1 = arith.constant 0 : i32
    return %c0_i32, %c0_i32_0 : i32, i32
  }
  func.func @transform_2(%arg0: i32, %arg1: i32) -> (i32, i32) {
    %c0_i32 = arith.constant 0 : i32
    %c0_i32_0 = arith.constant 0 : i32
    %c0_i32_1 = arith.constant 0 : i32
    return %c0_i32, %c0_i32_0 : i32, i32
  }
  func.func @transform_3(%arg0: i32, %arg1: i32) -> (i32, i32) {
    %c0_i32 = arith.constant 0 : i32
    %c0_i32_0 = arith.constant 0 : i32
    %c0_i32_1 = arith.constant 0 : i32
    return %c0_i32, %c0_i32_0 : i32, i32
  }
  func.func @transform_4(%arg0: i32, %arg1: i32) -> (i32, i32) {
    %c0_i32 = arith.constant 0 : i32
    %c0_i32_0 = arith.constant 0 : i32
    %c0_i32_1 = arith.constant 0 : i32
    return %c0_i32, %c0_i32_0 : i32, i32
  }
  func.func @transform_5(%arg0: i32, %arg1: i32) -> (i32, i32, i32) {
    %c0_i32 = arith.constant 0 : i32
    %c0_i32_0 = arith.constant 0 : i32
    return %arg0, %c0_i32, %arg1 : i32, i32, i32
  }
}

</mosaic_0001>

<llo_original>
// kernel: custom-call.8
$region0: #{custom-call.8}
  %s0 = inlined_call_operand.vmem [shape: f32[2,16], index: 0, kind: output, shape index: {}]

// kernel: neg.1
$region0: #{neg.1}
  #allocation0 [shape = 's32[1]{0}', space=sflag, size = 0x4, scoped, tag = 'scoped memory for neg.1']
  %s0 = inlined_call_operand.vmem [shape: f32[2,8,16], index: 0, kind: input, shape index: {}]
  %s1 = inlined_call_operand.vmem [shape: f32[2,8,16], index: 1, kind: output, shape index: {}]
  %v2 = vld [vmem:[%s0] sm:$0xff]
  %3 = xla_tuple %v2
  %4 = xla_tuple %3
  %v5 = vxor.u32 %v2, 2147483648
  %6 = xla_tuple %v5
  %7 = vst [vmem:[%s1] sm:$0xff] %v5
  %s8 = scalar_lea.vmem %s0, 8
  %v9 = vld [vmem:[%s8] sm:$0xff]
  %10 = xla_tuple %v9
  %11 = xla_tuple %10
  %v12 = vxor.u32 %v9, 2147483648
  %13 = xla_tuple %v12
  %s14 = scalar_lea.vmem %s1, 8
  %15 = vst [vmem:[%s14] sm:$0xff] %v12

// kernel: transition_down.1
$region0: #{transition_down.1}
  #allocation0 [shape = 'u32[]', space=smem, size = 0x4, offset = 0x4, fixed_abs, tag = 'smem constant byte address 0x4 - core index']
  #allocation1 [shape = 'u32[144,128]{1,0:T(1,128)}', space=vmem, size = 0x12000, scoped, tag = 'internal scratch']
  %s0 = inlined_call_operand.vmem [shape: bf16[2,4,32,8], index: 0, kind: input, shape index: {}]
  %s1 = inlined_call_operand.vmem [shape: bf16[32,32], index: 1, kind: input, shape index: {}]
  %s2 = inlined_call_operand.vmem [shape: f32[32,1], index: 2, kind: input, shape index: {}]
  %s3 = inlined_call_operand.vmem [shape: bf16[32,32], index: 3, kind: input, shape index: {}]
  %s4 = inlined_call_operand.vmem [shape: f32[32,1], index: 4, kind: input, shape index: {}]
  %s5 = inlined_call_operand.vmem [shape: f32[2,32,8], index: 5, kind: output, shape index: {}]
  %s6 = sld [smem:[#allocation0]]
  $region53: #{transition_down.1} parent=0
    _
  %s8 = ssub.s32 1, %s6
  %s9 = scalar_select 0, %s8, %s6
  loop: start=0, step=1, limit=4
  $region2: #{transition_down.1} parent=0 // loop_pre_header
    _
  $region3: #{transition_down.1} parent=0 // loop_header
    %s11 = sphi 0, %s15
    %p12 = scmp.ge.s32.totalorder %s11, 4
    %s18 = sphi 0, %s30
    %s19 = sphi 0, %s26
    %s20 = sphi 0, %s18
    %s21 = sphi 0, %s19
    %s22 = sphi 0, %s20
    %s23 = sphi 0, %s21
    %s35 = sphi 0, %s37
    %s38 = sphi 0, %s35
    %s39 = sphi 0, %s38
    %s55 = sphi 0, %s39
    %s59 = sphi 0, %s59
    %s61 = sphi 0, %s59
    %s62 = sphi 0, %s61
    %s76 = sphi 0, %s62
    %s80 = sphi 0, %s80
    %s82 = sphi 0, %s80
    %s83 = sphi 0, %s82
    %s97 = sphi 0, %s83
    %s101 = sphi 0, %s101
    %s103 = sphi 0, %s101
    %s104 = sphi 0, %s103
    %s118 = sphi 0, %s104
    %s122 = sphi 0, %s122
    %s124 = sphi 0, %s122
    %s125 = sphi 0, %s124
    %s139 = sphi 0, %s125
    %s147 = sphi 0, %s149
    %s150 = sphi 0, %s147
    %s151 = sphi 0, %s150
    %s167 = sphi 0, %s151
  $region4: #{transition_down.1} parent=0 // loop_header_branch
    %14 = sbr.rel (%p12) target = $region8
  $region5: #{transition_down.1} parent=0 // loop_body
    %s16 = ssub.s32 %s11, 1
    %s17 = ssub.s32 %s11, 2
    %s24 = sadd.s32 1, %s19
    %p25 = scmp.ge.s32.totalorder %s24, 1
    %s26 = scalar_select %p25, 0, %s24
    %s27 = sadd.s32 1, %s18
    %s28 = scalar_select %p25, %s27, %s18
    %p29 = scmp.ge.s32.totalorder %s28, 2
    %s30 = scalar_select %p29, 0, %s28
    %s31 = ssub.s32 %s18, %s30
    %s32 = ssub.s32 %s19, %s26
    %s33 = sor.u32 %s31, %s32
    %p34 = scmp.eq.s32.totalorder %s33, 0
    %s36 = sadd.s32 %s35, 1
    %s37 = scalar_select %p34, %s35, %s36
    %p40 = pneg %p34
    %p41 = scmp.eq.s32.totalorder %s11, 1
    %p42 = por %p40, %p41
    %p43 = scmp.ne.s32.totalorder %s35, %s38
    %p44 = scmp.eq.s32.totalorder %s11, 0
    %p45 = por %p43, %p44
    %p46 = scmp.ne.s32.totalorder %s35, %s38
    %p47 = scmp.eq.s32.totalorder %s16, 1
    %p48 = por %p46, %p47
    %p49 = scmp.ne.s32.totalorder %s38, %s39
    %p50 = scmp.eq.s32.totalorder %s16, 0
    %p51 = por %p49, %p50
    %p52 = scmp.ne.s32.totalorder %s38, %s39
    %p53 = scmp.eq.s32.totalorder %s17, 1
    %p54 = por %p52, %p53
    %p56 = scmp.ne.s32.totalorder %s39, %s55
    %p57 = scmp.eq.s32.totalorder %s17, 0
    %p58 = por %p56, %p57
    %s60 = sadd.s32 %s59, 1
    %p63 = scmp.eq.s32.totalorder %s11, 1
    %p64 = scmp.ne.s32.totalorder %s59, %s61
    %p65 = scmp.eq.s32.totalorder %s11, 0
    %p66 = por %p64, %p65
    %p67 = scmp.ne.s32.totalorder %s59, %s61
    %p68 = scmp.eq.s32.totalorder %s16, 1
    %p69 = por %p67, %p68
    %p70 = scmp.ne.s32.totalorder %s61, %s62
    %p71 = scmp.eq.s32.totalorder %s16, 0
    %p72 = por %p70, %p71
    %p73 = scmp.ne.s32.totalorder %s61, %s62
    %p74 = scmp.eq.s32.totalorder %s17, 1
    %p75 = por %p73, %p74
    %p77 = scmp.ne.s32.totalorder %s62, %s76
    %p78 = scmp.eq.s32.totalorder %s17, 0
    %p79 = por %p77, %p78
    %s81 = sadd.s32 %s80, 1
    %p84 = scmp.eq.s32.totalorder %s11, 1
    %p85 = scmp.ne.s32.totalorder %s80, %s82
    %p86 = scmp.eq.s32.totalorder %s11, 0
    %p87 = por %p85, %p86
    %p88 = scmp.ne.s32.totalorder %s80, %s82
    %p89 = scmp.eq.s32.totalorder %s16, 1
    %p90 = por %p88, %p89
    %p91 = scmp.ne.s32.totalorder %s82, %s83
    %p92 = scmp.eq.s32.totalorder %s16, 0
    %p93 = por %p91, %p92
    %p94 = scmp.ne.s32.totalorder %s82, %s83
    %p95 = scmp.eq.s32.totalorder %s17, 1
    %p96 = por %p94, %p95
    %p98 = scmp.ne.s32.totalorder %s83, %s97
    %p99 = scmp.eq.s32.totalorder %s17, 0
    %p100 = por %p98, %p99
    %s102 = sadd.s32 %s101, 1
    %p105 = scmp.eq.s32.totalorder %s11, 1
    %p106 = scmp.ne.s32.totalorder %s101, %s103
    %p107 = scmp.eq.s32.totalorder %s11, 0
    %p108 = por %p106, %p107
    %p109 = scmp.ne.s32.totalorder %s101, %s103
    %p110 = scmp.eq.s32.totalorder %s16, 1
    %p111 = por %p109, %p110
    %p112 = scmp.ne.s32.totalorder %s103, %s104
    %p113 = scmp.eq.s32.totalorder %s16, 0
    %p114 = por %p112, %p113
    %p115 = scmp.ne.s32.totalorder %s103, %s104
    %p116 = scmp.eq.s32.totalorder %s17, 1
    %p117 = por %p115, %p116
    %p119 = scmp.ne.s32.totalorder %s104, %s118
    %p120 = scmp.eq.s32.totalorder %s17, 0
    %p121 = por %p119, %p120
    %s123 = sadd.s32 %s122, 1
    %p126 = scmp.eq.s32.totalorder %s11, 1
    %p127 = scmp.ne.s32.totalorder %s122, %s124
    %p128 = scmp.eq.s32.totalorder %s11, 0
    %p129 = por %p127, %p128
    %p130 = scmp.ne.s32.totalorder %s122, %s124
    %p131 = scmp.eq.s32.totalorder %s16, 1
    %p132 = por %p130, %p131
    %p133 = scmp.ne.s32.totalorder %s124, %s125
    %p134 = scmp.eq.s32.totalorder %s16, 0
    %p135 = por %p133, %p134
    %p136 = scmp.ne.s32.totalorder %s124, %s125
    %p137 = scmp.eq.s32.totalorder %s17, 1
    %p138 = por %p136, %p137
    %p140 = scmp.ne.s32.totalorder %s125, %s139
    %p141 = scmp.eq.s32.totalorder %s17, 0
    %p142 = por %p140, %p141
    %s143 = ssub.s32 %s18, %s30
    %s144 = ssub.s32 %s19, %s26
    %s145 = sor.u32 %s143, %s144
    %p146 = scmp.eq.s32.totalorder %s145, 0
    %s148 = sadd.s32 %s147, 1
    %s149 = scalar_select %p146, %s147, %s148
    %p152 = pneg %p146
    %p153 = scmp.eq.s32.totalorder %s11, 1
    %p154 = por %p152, %p153
    %p155 = scmp.ne.s32.totalorder %s147, %s150
    %p156 = scmp.eq.s32.totalorder %s11, 0
    %p157 = por %p155, %p156
    %p158 = scmp.ne.s32.totalorder %s147, %s150
    %p159 = scmp.eq.s32.totalorder %s16, 1
    %p160 = por %p158, %p159
    %p161 = scmp.ne.s32.totalorder %s150, %s151
    %p162 = scmp.eq.s32.totalorder %s16, 0
    %p163 = por %p161, %p162
    %p164 = scmp.ne.s32.totalorder %s150, %s151
    %p165 = scmp.eq.s32.totalorder %s17, 1
    %p166 = por %p164, %p165
    %p168 = scmp.ne.s32.totalorder %s151, %s167
    %p169 = scmp.eq.s32.totalorder %s17, 0
    %p170 = por %p168, %p169
    %p171 = scmp.le.s32.totalorder 1, %s11
    %p172 = scmp.lt.s32.totalorder %s11, 3
    %p173 = pnand %p171, %p172
    %p174 = pneg %p173
    // Predicated region
    $region9: #{transition_down.1} parent=5 // pred_check
      _
    $region10: #{transition_down.1} parent=5 // pred_check_branch
      %176 = sbr.rel (%p173) target = $region12
    $region11: #{transition_down.1} parent=5 // pred_region
      %s177 = ssub.s32 %s11, 1
      // Predicated region
      $region13: #{transition_down.1} parent=11 // pred_check
        %p178 = pneg %p72
      $region14: #{transition_down.1} parent=11 // pred_check_branch
        %180 = sbr.rel (%p178) target = $region16
      $region15: #{transition_down.1} parent=11 // pred_region
        _
      $region16: #{transition_down.1} parent=11 // pred_fallthru
        _
      // Predicated region
      $region17: #{transition_down.1} parent=11 // pred_check
        %p181 = pneg %p93
      $region18: #{transition_down.1} parent=11 // pred_check_branch
        %183 = sbr.rel (%p181) target = $region20
      $region19: #{transition_down.1} parent=11 // pred_region
        _
      $region20: #{transition_down.1} parent=11 // pred_fallthru
        _
      // Predicated region
      $region21: #{transition_down.1} parent=11 // pred_check
        %p184 = pneg %p114
      $region22: #{transition_down.1} parent=11 // pred_check_branch
        %186 = sbr.rel (%p184) target = $region24
      $region23: #{transition_down.1} parent=11 // pred_region
        _
      $region24: #{transition_down.1} parent=11 // pred_fallthru
        _
      // Predicated region
      $region25: #{transition_down.1} parent=11 // pred_check
        %p187 = pneg %p135
      $region26: #{transition_down.1} parent=11 // pred_check_branch
        %189 = sbr.rel (%p187) target = $region28
      $region27: #{transition_down.1} parent=11 // pred_region
        _
      $region28: #{transition_down.1} parent=11 // pred_fallthru
        _
    $region12: #{transition_down.1} parent=5 // pred_fallthru
      _
    %p190 = scmp.lt.s32.totalorder %s11, 2
    // Predicated region
    $region29: #{transition_down.1} parent=5 // pred_check
      %p191 = pneg %p190
    $region30: #{transition_down.1} parent=5 // pred_check_branch
      %193 = sbr.rel (%p191) target = $region32
    $region31: #{transition_down.1} parent=5 // pred_region
      // Predicated region
      $region33: #{transition_down.1} parent=31 // pred_check
        %p194 = pneg %p45
      $region34: #{transition_down.1} parent=31 // pred_check_branch
        %196 = sbr.rel (%p194) target = $region36
      $region35: #{transition_down.1} parent=31 // pred_region
        %p197 = scmp.lt.s32.totalorder %s18, 1
        %s198 = scalar_select %p197, %s18, 1
        %p199 = scmp.lt.s32.totalorder %s19, 0
        %s200 = scalar_select %p199, %s19, 0
        %s201 = smul.addr %s198, 16
        %s202 = sadd.s32 %s200, %s201
        %s203 = smul.addr %s202, 4
        %s204 = scalar_lea.vmem %s0, %s203
      $region36: #{transition_down.1} parent=31 // pred_fallthru
        _
    $region32: #{transition_down.1} parent=5 // pred_fallthru
      _
    %p205 = scmp.le.s32.totalorder 1, %s11
    %p206 = scmp.lt.s32.totalorder %s11, 3
    %p207 = pnand %p205, %p206
    %p208 = pneg %p207
    // Predicated region
    $region37: #{transition_down.1} parent=5 // pred_check
      _
    $region38: #{transition_down.1} parent=5 // pred_check_branch
      %210 = sbr.rel (%p207) target = $region40
    $region39: #{transition_down.1} parent=5 // pred_region
      %s211 = ssub.s32 %s11, 1
      %p212 = scmp.lt.s32.totalorder %s20, 1
      %s213 = scalar_select %p212, %s20, 1
      %p214 = scmp.lt.s32.totalorder %s21, 0
      %s215 = scalar_select %p214, %s21, 0
      %s216 = smul.addr %s213, 16
      %s217 = sadd.s32 %s215, %s216
      %s218 = smul.addr %s217, 4
      %s219 = scalar_lea.vmem %s0, %s218
      %p220 = pneg %p51
      %p221 = pneg %p48
      %p222 = pneg %p72
      %p223 = pneg %p69
      %p224 = pneg %p93
      %p225 = pneg %p90
      %p226 = pneg %p114
      %p227 = pneg %p111
      %p228 = pneg %p135
      %p229 = pneg %p132
      %p230 = pneg %p163
      %p231 = pneg %p160
      %p232 = scmp.lt.s32.totalorder %s20, 1
      %s233 = scalar_select %p232, %s20, 1
      %p234 = scmp.lt.s32.totalorder %s21, 0
      %s235 = scalar_select %p234, %s21, 0
      %s236 = smul.addr %s233, 4
      %s237 = sadd.s32 %s235, %s236
      %s238 = smul.addr %s237, 8
      %s239 = scalar_lea.vmem %s5, %s238
      %p240 = scmp.lt.s32.totalorder %s20, 1
      %s241 = scalar_select %p240, %s20, 1
      %p242 = scmp.lt.s32.totalorder %s21, 0
      %s243 = scalar_select %p242, %s21, 0
      %s244 = smul.addr %s241, 16
      %s245 = sadd.s32 %s243, %s244
      %s246 = smul.addr %s245, 4
      %s247 = scalar_lea.vmem %s0, %s246
      %p248 = scmp.lt.s32.totalorder %s20, 1
      %s249 = scalar_select %p248, %s20, 1
      %p250 = scmp.lt.s32.totalorder %s21, 0
      %s251 = scalar_select %p250, %s21, 0
      %s252 = smul.addr %s249, 4
      %s253 = sadd.s32 %s251, %s252
      %s254 = smul.addr %s253, 8
      %s255 = scalar_lea.vmem %s5, %s254
      %v257 = vld [vmem:[%s1] sm:$0xf]
      %v258 = vld [vmem:[%s1 + $0x4] sm:$0xf]
      %v259 = vld [vmem:[%s1 + $0x8] sm:$0xf]
      %v260 = vld [vmem:[%s1 + $0xc] sm:$0xf]
      %v261 = vld [vmem:[%s2] sm:$0xff]
      %v262 = vld [vmem:[%s2 + $0x8] sm:$0xff]
      %v263 = vld [vmem:[%s2 + $0x10] sm:$0xff]
      %v264 = vld [vmem:[%s2 + $0x18] sm:$0xff]
      %v265 = vld [vmem:[%s3] sm:$0xf]
      %v266 = vld [vmem:[%s3 + $0x4] sm:$0xf]
      %v267 = vld [vmem:[%s3 + $0x8] sm:$0xf]
      %v268 = vld [vmem:[%s3 + $0xc] sm:$0xf]
      %v269 = vld [vmem:[%s4] sm:$0xff]
      %v270 = vld [vmem:[%s4 + $0x8] sm:$0xff]
      %v271 = vld [vmem:[%s4 + $0x10] sm:$0xff]
      %v272 = vld [vmem:[%s4 + $0x18] sm:$0xff]
      %v273 = vld [vmem:[%s247] sm:$0xf]
      %v274 = vld [vmem:[%s247 + $0x4] sm:$0xf]
      %v275 = vld [vmem:[%s247 + $0x8] sm:$0xf]
      %v276 = vld [vmem:[%s247 + $0xc] sm:$0xf]
      %278 = vset.pattern.permute.xlu0 0
      %279 = vperm.xlu0 %278, %v261
      %v280 = vpop.permute.xlu0 %279
      %283 = vset.pattern.permute.xlu0 0
      %284 = vperm.xlu0 %283, %v262
      %v285 = vpop.permute.xlu0 %284
      %288 = vset.pattern.permute.xlu0 0
      %289 = vperm.xlu0 %288, %v263
      %v290 = vpop.permute.xlu0 %289
      %293 = vset.pattern.permute.xlu0 0
      %294 = vperm.xlu0 %293, %v264
      %v295 = vpop.permute.xlu0 %294
      %v301 = vunpack.c.l.b16 %v257
      %v302 = vunpack.c.l.b16 %v258
      %v303 = vunpack.c.l.b16 %v259
      %v304 = vunpack.c.l.b16 %v260
      %v305 = vpack.c.b16 %v302, %v301
      %v306 = vpack.c.b16 %v304, %v303
      %v311 = vunpack.c.l.b16 %v273
      %v312 = vunpack.c.l.b16 %v274
      %v313 = vunpack.c.l.b16 %v275
      %v314 = vunpack.c.l.b16 %v276
      %v315 = vpack.c.b16 %v312, %v311
      %v316 = vpack.c.b16 %v314, %v313
      %vm319 = vcmask 261120
      %v321 = vsel %vm319, %v305, 0
      %v324 = vsel %vm319, %v306, 0
      %326 = vmatprep.subr.bf16.mxu0 0
      %327 = vmatpush1.bf16.msra.mxu0 %v315
      %328 = vmatprep.subr.bf16.mxu0 0
      %329 = vmatpush1.bf16.msra.mxu0 %v316
      %330 = vmatprep.subr.bf16.mxu0 0
      %331 = vmatpush1.bf16.msra.mxu0 0
      %332 = vmatprep.subr.bf16.mxu0 0
      %333 = vmatpush1.bf16.msra.mxu0 0
      %334 = vmatprep.subr.bf16.mxu0 0
      %335 = vmatpush1.bf16.msra.mxu0 0
      %336 = vmatprep.subr.bf16.mxu0 0
      %337 = vmatpush1.bf16.msra.mxu0 0
      %338 = vmatprep.subr.bf16.mxu0 0
      %339 = vmatpush1.bf16.msra.mxu0 0
      %340 = vmatprep.subr.bf16.mxu0 0
      %341 = vmatpush1.bf16.msra.mxu0 0
      %342 = vmatprep.subr.bf16.mxu0 0
      %343 = vmatpush1.bf16.msra.mxu0 0
      %344 = vmatprep.subr.bf16.mxu0 0
      %345 = vmatpush1.bf16.msra.mxu0 0
      %346 = vmatprep.subr.bf16.mxu0 0
      %347 = vmatpush1.bf16.msra.mxu0 0
      %348 = vmatprep.subr.bf16.mxu0 0
      %349 = vmatpush1.bf16.msra.mxu0 0
      %350 = vmatprep.subr.bf16.mxu0 0
      %351 = vmatpush1.bf16.msra.mxu0 0
      %352 = vmatprep.subr.bf16.mxu0 0
      %353 = vmatpush1.bf16.msra.mxu0 0
      %354 = vmatprep.subr.bf16.mxu0 0
      %355 = vmatpush1.bf16.msra.mxu0 0
      %356 = vmatprep.subr.bf16.mxu0 0
      %357 = vmatpush1.bf16.msra.mxu0 0
      %358 = vmatprep.mubr.bf16.mxu0 0
      %359 = vmatmul.mubr.bf16.gmra.mrb[0].mxu0 %v321
      %v360 = vpop.f32.mrb[0].mxu0
      %v361 = vadd.f32 %v280, %v360
      %v362 = vpop.f32.mrb[0].mxu0
      %v363 = vpop.f32.mrb[0].mxu0
      %v364 = vadd.f32 %v285, %v363
      %v365 = vpop.f32.mrb[0].mxu0
      %366 = vmatprep.mubr.bf16.mxu0 0
      %367 = vmatmul.mubr.bf16.gmra.mrb[0].mxu0 %v324
      %v368 = vpop.f32.mrb[0].mxu0
      %v369 = vadd.f32 %v290, %v368
      %v370 = vpop.f32.mrb[0].mxu0
      %v371 = vpop.f32.mrb[0].mxu0
      %v372 = vadd.f32 %v295, %v371
      %v373 = vpop.f32.mrb[0].mxu0
      %374 = vdwg.mxu0
      %v375 = vmax.f32 %v361, 0.0
      %v376 = vmax.f32 %v364, 0.0
      %v377 = vmax.f32 %v369, 0.0
      %v378 = vmax.f32 %v372, 0.0
      %v379 = vpack.c.bf16 %v376, %v375
      %v380 = vpack.c.bf16 %v378, %v377
      %382 = vset.pattern.permute.xlu0 0
      %383 = vperm.xlu0 %382, %v269
      %v384 = vpop.permute.xlu0 %383
      %387 = vset.pattern.permute.xlu0 0
      %388 = vperm.xlu0 %387, %v270
      %v389 = vpop.permute.xlu0 %388
      %392 = vset.pattern.permute.xlu0 0
      %393 = vperm.xlu0 %392, %v271
      %v394 = vpop.permute.xlu0 %393
      %397 = vset.pattern.permute.xlu0 0
      %398 = vperm.xlu0 %397, %v272
      %v399 = vpop.permute.xlu0 %398
      %v405 = vunpack.c.l.b16 %v265
      %v406 = vunpack.c.l.b16 %v266
      %v407 = vunpack.c.l.b16 %v267
      %v408 = vunpack.c.l.b16 %v268
      %v409 = vpack.c.b16 %v406, %v405
      %v410 = vpack.c.b16 %v408, %v407
      %v412 = vsel %vm319, %v409, 0
      %v415 = vsel %vm319, %v410, 0
      %417 = vmatprep.subr.bf16.mxu0 0
      %418 = vmatpush1.bf16.msra.mxu0 %v379
      %419 = vmatprep.subr.bf16.mxu0 0
      %420 = vmatpush1.bf16.msra.mxu0 %v380
      %421 = vmatprep.subr.bf16.mxu0 0
      %422 = vmatpush1.bf16.msra.mxu0 0
      %423 = vmatprep.subr.bf16.mxu0 0
      %424 = vmatpush1.bf16.msra.mxu0 0
      %425 = vmatprep.subr.bf16.mxu0 0
      %426 = vmatpush1.bf16.msra.mxu0 0
      %427 = vmatprep.subr.bf16.mxu0 0
      %428 = vmatpush1.bf16.msra.mxu0 0
      %429 = vmatprep.subr.bf16.mxu0 0
      %430 = vmatpush1.bf16.msra.mxu0 0
      %431 = vmatprep.subr.bf16.mxu0 0
      %432 = vmatpush1.bf16.msra.mxu0 0
      %433 = vmatprep.subr.bf16.mxu0 0
      %434 = vmatpush1.bf16.msra.mxu0 0
      %435 = vmatprep.subr.bf16.mxu0 0
      %436 = vmatpush1.bf16.msra.mxu0 0
      %437 = vmatprep.subr.bf16.mxu0 0
      %438 = vmatpush1.bf16.msra.mxu0 0
      %439 = vmatprep.subr.bf16.mxu0 0
      %440 = vmatpush1.bf16.msra.mxu0 0
      %441 = vmatprep.subr.bf16.mxu0 0
      %442 = vmatpush1.bf16.msra.mxu0 0
      %443 = vmatprep.subr.bf16.mxu0 0
      %444 = vmatpush1.bf16.msra.mxu0 0
      %445 = vmatprep.subr.bf16.mxu0 0
      %446 = vmatpush1.bf16.msra.mxu0 0
      %447 = vmatprep.subr.bf16.mxu0 0
      %448 = vmatpush1.bf16.msra.mxu0 0
      %449 = vmatprep.mubr.bf16.mxu0 0
      %450 = vmatmul.mubr.bf16.gmra.mrb[0].mxu0 %v412
      %v451 = vpop.f32.mrb[0].mxu0
      %v452 = vadd.f32 %v384, %v451
      %v453 = vpop.f32.mrb[0].mxu0
      %v454 = vpop.f32.mrb[0].mxu0
      %v455 = vadd.f32 %v389, %v454
      %v456 = vpop.f32.mrb[0].mxu0
      %457 = vmatprep.mubr.bf16.mxu0 0
      %458 = vmatmul.mubr.bf16.gmra.mrb[0].mxu0 %v415
      %v459 = vpop.f32.mrb[0].mxu0
      %v460 = vadd.f32 %v394, %v459
      %v461 = vpop.f32.mrb[0].mxu0
      %v462 = vpop.f32.mrb[0].mxu0
      %v463 = vadd.f32 %v399, %v462
      %v464 = vpop.f32.mrb[0].mxu0
      %465 = vdwg.mxu0
      %v466 = vmax.f32 %v452, 0.0
      %v467 = vmax.f32 %v455, 0.0
      %v468 = vmax.f32 %v460, 0.0
      %v469 = vmax.f32 %v463, 0.0
      %v470 = vmax.f32 %v466, 0.0
      %v471 = vmax.f32 %v467, 0.0
      %v472 = vmax.f32 %v468, 0.0
      %v473 = vmax.f32 %v469, 0.0
      %s474 = scalar_lea.vmem %s247, 16
      %v475 = vld [vmem:[%s474] sm:$0xf]
      %v476 = vld [vmem:[%s474 + $0x4] sm:$0xf]
      %v477 = vld [vmem:[%s474 + $0x8] sm:$0xf]
      %v478 = vld [vmem:[%s474 + $0xc] sm:$0xf]
      %v483 = vunpack.c.l.b16 %v475
      %v484 = vunpack.c.l.b16 %v476
      %v485 = vunpack.c.l.b16 %v477
      %v486 = vunpack.c.l.b16 %v478
      %v487 = vpack.c.b16 %v484, %v483
      %v488 = vpack.c.b16 %v486, %v485
      %491 = vmatprep.subr.bf16.mxu0 0
      %492 = vmatpush1.bf16.msra.mxu0 %v487
      %493 = vmatprep.subr.bf16.mxu0 0
      %494 = vmatpush1.bf16.msra.mxu0 %v488
      %495 = vmatprep.subr.bf16.mxu0 0
      %496 = vmatpush1.bf16.msra.mxu0 0
      %497 = vmatprep.subr.bf16.mxu0 0
      %498 = vmatpush1.bf16.msra.mxu0 0
      %499 = vmatprep.subr.bf16.mxu0 0
      %500 = vmatpush1.bf16.msra.mxu0 0
      %501 = vmatprep.subr.bf16.mxu0 0
      %502 = vmatpush1.bf16.msra.mxu0 0
      %503 = vmatprep.subr.bf16.mxu0 0
      %504 = vmatpush1.bf16.msra.mxu0 0
      %505 = vmatprep.subr.bf16.mxu0 0
      %506 = vmatpush1.bf16.msra.mxu0 0
      %507 = vmatprep.subr.bf16.mxu0 0
      %508 = vmatpush1.bf16.msra.mxu0 0
      %509 = vmatprep.subr.bf16.mxu0 0
      %510 = vmatpush1.bf16.msra.mxu0 0
      %511 = vmatprep.subr.bf16.mxu0 0
      %512 = vmatpush1.bf16.msra.mxu0 0
      %513 = vmatprep.subr.bf16.mxu0 0
      %514 = vmatpush1.bf16.msra.mxu0 0
      %515 = vmatprep.subr.bf16.mxu0 0
      %516 = vmatpush1.bf16.msra.mxu0 0
      %517 = vmatprep.subr.bf16.mxu0 0
      %518 = vmatpush1.bf16.msra.mxu0 0
      %519 = vmatprep.subr.bf16.mxu0 0
      %520 = vmatpush1.bf16.msra.mxu0 0
      %521 = vmatprep.subr.bf16.mxu0 0
      %522 = vmatpush1.bf16.msra.mxu0 0
      %523 = vmatprep.mubr.bf16.mxu0 0
      %524 = vmatmul.mubr.bf16.gmra.mrb[0].mxu0 %v321
      %v525 = vpop.f32.mrb[0].mxu0
      %v526 = vadd.f32 %v280, %v525
      %v527 = vpop.f32.mrb[0].mxu0
      %v528 = vpop.f32.mrb[0].mxu0
      %v529 = vadd.f32 %v285, %v528
      %v530 = vpop.f32.mrb[0].mxu0
      %531 = vmatprep.mubr.bf16.mxu0 0
      %532 = vmatmul.mubr.bf16.gmra.mrb[0].mxu0 %v324
      %v533 = vpop.f32.mrb[0].mxu0
      %v534 = vadd.f32 %v290, %v533
      %v535 = vpop.f32.mrb[0].mxu0
      %v536 = vpop.f32.mrb[0].mxu0
      %v537 = vadd.f32 %v295, %v536
      %v538 = vpop.f32.mrb[0].mxu0
      %539 = vdwg.mxu0
      %v540 = vmax.f32 %v526, 0.0
      %v541 = vmax.f32 %v529, 0.0
      %v542 = vmax.f32 %v534, 0.0
      %v543 = vmax.f32 %v537, 0.0
      %v544 = vpack.c.bf16 %v541, %v540
      %v545 = vpack.c.bf16 %v543, %v542
      %546 = vmatprep.subr.bf16.mxu0 0
      %547 = vmatpush1.bf16.msra.mxu0 %v544
      %548 = vmatprep.subr.bf16.mxu0 0
      %549 = vmatpush1.bf16.msra.mxu0 %v545
      %550 = vmatprep.subr.bf16.mxu0 0
      %551 = vmatpush1.bf16.msra.mxu0 0
      %552 = vmatprep.subr.bf16.mxu0 0
      %553 = vmatpush1.bf16.msra.mxu0 0
      %554 = vmatprep.subr.bf16.mxu0 0
      %555 = vmatpush1.bf16.msra.mxu0 0
      %556 = vmatprep.subr.bf16.mxu0 0
      %557 = vmatpush1.bf16.msra.mxu0 0
      %558 = vmatprep.subr.bf16.mxu0 0
      %559 = vmatpush1.bf16.msra.mxu0 0
      %560 = vmatprep.subr.bf16.mxu0 0
      %561 = vmatpush1.bf16.msra.mxu0 0
      %562 = vmatprep.subr.bf16.mxu0 0
      %563 = vmatpush1.bf16.msra.mxu0 0
      %564 = vmatprep.subr.bf16.mxu0 0
      %565 = vmatpush1.bf16.msra.mxu0 0
      %566 = vmatprep.subr.bf16.mxu0 0
      %567 = vmatpush1.bf16.msra.mxu0 0
      %568 = vmatprep.subr.bf16.mxu0 0
      %569 = vmatpush1.bf16.msra.mxu0 0
      %570 = vmatprep.subr.bf16.mxu0 0
      %571 = vmatpush1.bf16.msra.mxu0 0
      %572 = vmatprep.subr.bf16.mxu0 0
      %573 = vmatpush1.bf16.msra.mxu0 0
      %574 = vmatprep.subr.bf16.mxu0 0
      %575 = vmatpush1.bf16.msra.mxu0 0
      %576 = vmatprep.subr.bf16.mxu0 0
      %577 = vmatpush1.bf16.msra.mxu0 0
      %578 = vmatprep.mubr.bf16.mxu0 0
      %579 = vmatmul.mubr.bf16.gmra.mrb[0].mxu0 %v412
      %v580 = vpop.f32.mrb[0].mxu0
      %v581 = vadd.f32 %v384, %v580
      %v582 = vpop.f32.mrb[0].mxu0
      %v583 = vpop.f32.mrb[0].mxu0
      %v584 = vadd.f32 %v389, %v583
      %v585 = vpop.f32.mrb[0].mxu0
      %586 = vmatprep.mubr.bf16.mxu0 0
      %587 = vmatmul.mubr.bf16.gmra.mrb[0].mxu0 %v415
      %v588 = vpop.f32.mrb[0].mxu0
      %v589 = vadd.f32 %v394, %v588
      %v590 = vpop.f32.mrb[0].mxu0
      %v591 = vpop.f32.mrb[0].mxu0
      %v592 = vadd.f32 %v399, %v591
      %v593 = vpop.f32.mrb[0].mxu0
      %594 = vdwg.mxu0
      %v595 = vmax.f32 %v581, 0.0
      %v596 = vmax.f32 %v584, 0.0
      %v597 = vmax.f32 %v589, 0.0
      %v598 = vmax.f32 %v592, 0.0
      %v599 = vmax.f32 %v470, %v595
      %v600 = vmax.f32 %v471, %v596
      %v601 = vmax.f32 %v472, %v597
      %v602 = vmax.f32 %v473, %v598
      %s603 = scalar_lea.vmem %s247, 32
      %v604 = vld [vmem:[%s603] sm:$0xf]
      %v605 = vld [vmem:[%s603 + $0x4] sm:$0xf]
      %v606 = vld [vmem:[%s603 + $0x8] sm:$0xf]
      %v607 = vld [vmem:[%s603 + $0xc] sm:$0xf]
      %v612 = vunpack.c.l.b16 %v604
      %v613 = vunpack.c.l.b16 %v605
      %v614 = vunpack.c.l.b16 %v606
      %v615 = vunpack.c.l.b16 %v607
      %v616 = vpack.c.b16 %v613, %v612
      %v617 = vpack.c.b16 %v615, %v614
      %620 = vmatprep.subr.bf16.mxu0 0
      %621 = vmatpush1.bf16.msra.mxu0 %v616
      %622 = vmatprep.subr.bf16.mxu0 0
      %623 = vmatpush1.bf16.msra.mxu0 %v617
      %624 = vmatprep.subr.bf16.mxu0 0
      %625 = vmatpush1.bf16.msra.mxu0 0
      %626 = vmatprep.subr.bf16.mxu0 0
      %627 = vmatpush1.bf16.msra.mxu0 0
      %628 = vmatprep.subr.bf16.mxu0 0
      %629 = vmatpush1.bf16.msra.mxu0 0
      %630 = vmatprep.subr.bf16.mxu0 0
      %631 = vmatpush1.bf16.msra.mxu0 0
      %632 = vmatprep.subr.bf16.mxu0 0
      %633 = vmatpush1.bf16.msra.mxu0 0
      %634 = vmatprep.subr.bf16.mxu0 0
      %635 = vmatpush1.bf16.msra.mxu0 0
      %636 = vmatprep.subr.bf16.mxu0 0
      %637 = vmatpush1.bf16.msra.mxu0 0
      %638 = vmatprep.subr.bf16.mxu0 0
      %639 = vmatpush1.bf16.msra.mxu0 0
      %640 = vmatprep.subr.bf16.mxu0 0
      %641 = vmatpush1.bf16.msra.mxu0 0
      %642 = vmatprep.subr.bf16.mxu0 0
      %643 = vmatpush1.bf16.msra.mxu0 0
      %644 = vmatprep.subr.bf16.mxu0 0
      %645 = vmatpush1.bf16.msra.mxu0 0
      %646 = vmatprep.subr.bf16.mxu0 0
      %647 = vmatpush1.bf16.msra.mxu0 0
      %648 = vmatprep.subr.bf16.mxu0 0
      %649 = vmatpush1.bf16.msra.mxu0 0
      %650 = vmatprep.subr.bf16.mxu0 0
      %651 = vmatpush1.bf16.msra.mxu0 0
      %652 = vmatprep.mubr.bf16.mxu0 0
      %653 = vmatmul.mubr.bf16.gmra.mrb[0].mxu0 %v321
      %v654 = vpop.f32.mrb[0].mxu0
      %v655 = vadd.f32 %v280, %v654
      %v656 = vpop.f32.mrb[0].mxu0
      %v657 = vpop.f32.mrb[0].mxu0
      %v658 = vadd.f32 %v285, %v657
      %v659 = vpop.f32.mrb[0].mxu0
      %660 = vmatprep.mubr.bf16.mxu0 0
      %661 = vmatmul.mubr.bf16.gmra.mrb[0].mxu0 %v324
      %v662 = vpop.f32.mrb[0].mxu0
      %v663 = vadd.f32 %v290, %v662
      %v664 = vpop.f32.mrb[0].mxu0
      %v665 = vpop.f32.mrb[0].mxu0
      %v666 = vadd.f32 %v295, %v665
      %v667 = vpop.f32.mrb[0].mxu0
      %668 = vdwg.mxu0
      %v669 = vmax.f32 %v655, 0.0
      %v670 = vmax.f32 %v658, 0.0
      %v671 = vmax.f32 %v663, 0.0
      %v672 = vmax.f32 %v666, 0.0
      %v673 = vpack.c.bf16 %v670, %v669
      %v674 = vpack.c.bf16 %v672, %v671
      %675 = vmatprep.subr.bf16.mxu0 0
      %676 = vmatpush1.bf16.msra.mxu0 %v673
      %677 = vmatprep.subr.bf16.mxu0 0
      %678 = vmatpush1.bf16.msra.mxu0 %v674
      %679 = vmatprep.subr.bf16.mxu0 0
      %680 = vmatpush1.bf16.msra.mxu0 0
      %681 = vmatprep.subr.bf16.mxu0 0
      %682 = vmatpush1.bf16.msra.mxu0 0
      %683 = vmatprep.subr.bf16.mxu0 0
      %684 = vmatpush1.bf16.msra.mxu0 0
      %685 = vmatprep.subr.bf16.mxu0 0
      %686 = vmatpush1.bf16.msra.mxu0 0
      %687 = vmatprep.subr.bf16.mxu0 0
      %688 = vmatpush1.bf16.msra.mxu0 0
      %689 = vmatprep.subr.bf16.mxu0 0
      %690 = vmatpush1.bf16.msra.mxu0 0
      %691 = vmatprep.subr.bf16.mxu0 0
      %692 = vmatpush1.bf16.msra.mxu0 0
      %693 = vmatprep.subr.bf16.mxu0 0
      %694 = vmatpush1.bf16.msra.mxu0 0
      %695 = vmatprep.subr.bf16.mxu0 0
      %696 = vmatpush1.bf16.msra.mxu0 0
      %697 = vmatprep.subr.bf16.mxu0 0
      %698 = vmatpush1.bf16.msra.mxu0 0
      %699 = vmatprep.subr.bf16.mxu0 0
      %700 = vmatpush1.bf16.msra.mxu0 0
      %701 = vmatprep.subr.bf16.mxu0 0
      %702 = vmatpush1.bf16.msra.mxu0 0
      %703 = vmatprep.subr.bf16.mxu0 0
      %704 = vmatpush1.bf16.msra.mxu0 0
      %705 = vmatprep.subr.bf16.mxu0 0
      %706 = vmatpush1.bf16.msra.mxu0 0
      %707 = vmatprep.mubr.bf16.mxu0 0
      %708 = vmatmul.mubr.bf16.gmra.mrb[0].mxu0 %v412
      %v709 = vpop.f32.mrb[0].mxu0
      %v710 = vadd.f32 %v384, %v709
      %v711 = vpop.f32.mrb[0].mxu0
      %v712 = vpop.f32.mrb[0].mxu0
      %v713 = vadd.f32 %v389, %v712
      %v714 = vpop.f32.mrb[0].mxu0
      %715 = vmatprep.mubr.bf16.mxu0 0
      %716 = vmatmul.mubr.bf16.gmra.mrb[0].mxu0 %v415
      %v717 = vpop.f32.mrb[0].mxu0
      %v718 = vadd.f32 %v394, %v717
      %v719 = vpop.f32.mrb[0].mxu0
      %v720 = vpop.f32.mrb[0].mxu0
      %v721 = vadd.f32 %v399, %v720
      %v722 = vpop.f32.mrb[0].mxu0
      %723 = vdwg.mxu0
      %v724 = vmax.f32 %v710, 0.0
      %v725 = vmax.f32 %v713, 0.0
      %v726 = vmax.f32 %v718, 0.0
      %v727 = vmax.f32 %v721, 0.0
      %v728 = vmax.f32 %v599, %v724
      %v729 = vmax.f32 %v600, %v725
      %v730 = vmax.f32 %v601, %v726
      %v731 = vmax.f32 %v602, %v727
      %s732 = scalar_lea.vmem %s247, 48
      %v733 = vld [vmem:[%s732] sm:$0xf]
      %v734 = vld [vmem:[%s732 + $0x4] sm:$0xf]
      %v735 = vld [vmem:[%s732 + $0x8] sm:$0xf]
      %v736 = vld [vmem:[%s732 + $0xc] sm:$0xf]
      %v741 = vunpack.c.l.b16 %v733
      %v742 = vunpack.c.l.b16 %v734
      %v743 = vunpack.c.l.b16 %v735
      %v744 = vunpack.c.l.b16 %v736
      %v745 = vpack.c.b16 %v742, %v741
      %v746 = vpack.c.b16 %v744, %v743
      %749 = vmatprep.subr.bf16.mxu0 0
      %750 = vmatpush1.bf16.msra.mxu0 %v745
      %751 = vmatprep.subr.bf16.mxu0 0
      %752 = vmatpush1.bf16.msra.mxu0 %v746
      %753 = vmatprep.subr.bf16.mxu0 0
      %754 = vmatpush1.bf16.msra.mxu0 0
      %755 = vmatprep.subr.bf16.mxu0 0
      %756 = vmatpush1.bf16.msra.mxu0 0
      %757 = vmatprep.subr.bf16.mxu0 0
      %758 = vmatpush1.bf16.msra.mxu0 0
      %759 = vmatprep.subr.bf16.mxu0 0
      %760 = vmatpush1.bf16.msra.mxu0 0
      %761 = vmatprep.subr.bf16.mxu0 0
      %762 = vmatpush1.bf16.msra.mxu0 0
      %763 = vmatprep.subr.bf16.mxu0 0
      %764 = vmatpush1.bf16.msra.mxu0 0
      %765 = vmatprep.subr.bf16.mxu0 0
      %766 = vmatpush1.bf16.msra.mxu0 0
      %767 = vmatprep.subr.bf16.mxu0 0
      %768 = vmatpush1.bf16.msra.mxu0 0
      %769 = vmatprep.subr.bf16.mxu0 0
      %770 = vmatpush1.bf16.msra.mxu0 0
      %771 = vmatprep.subr.bf16.mxu0 0
      %772 = vmatpush1.bf16.msra.mxu0 0
      %773 = vmatprep.subr.bf16.mxu0 0
      %774 = vmatpush1.bf16.msra.mxu0 0
      %775 = vmatprep.subr.bf16.mxu0 0
      %776 = vmatpush1.bf16.msra.mxu0 0
      %777 = vmatprep.subr.bf16.mxu0 0
      %778 = vmatpush1.bf16.msra.mxu0 0
      %779 = vmatprep.subr.bf16.mxu0 0
      %780 = vmatpush1.bf16.msra.mxu0 0
      %781 = vmatprep.mubr.bf16.mxu0 0
      %782 = vmatmul.mubr.bf16.gmra.mrb[0].mxu0 %v321
      %v783 = vpop.f32.mrb[0].mxu0
      %v784 = vadd.f32 %v280, %v783
      %v785 = vpop.f32.mrb[0].mxu0
      %v786 = vpop.f32.mrb[0].mxu0
      %v787 = vadd.f32 %v285, %v786
      %v788 = vpop.f32.mrb[0].mxu0
      %789 = vmatprep.mubr.bf16.mxu0 0
      %790 = vmatmul.mubr.bf16.gmra.mrb[0].mxu0 %v324
      %v791 = vpop.f32.mrb[0].mxu0
      %v792 = vadd.f32 %v290, %v791
      %v793 = vpop.f32.mrb[0].mxu0
      %v794 = vpop.f32.mrb[0].mxu0
      %v795 = vadd.f32 %v295, %v794
      %v796 = vpop.f32.mrb[0].mxu0
      %797 = vdwg.mxu0
      %v798 = vmax.f32 %v784, 0.0
      %v799 = vmax.f32 %v787, 0.0
      %v800 = vmax.f32 %v792, 0.0
      %v801 = vmax.f32 %v795, 0.0
      %v802 = vpack.c.bf16 %v799, %v798
      %v803 = vpack.c.bf16 %v801, %v800
      %804 = vmatprep.subr.bf16.mxu0 0
      %805 = vmatpush1.bf16.msra.mxu0 %v802
      %806 = vmatprep.subr.bf16.mxu0 0
      %807 = vmatpush1.bf16.msra.mxu0 %v803
      %808 = vmatprep.subr.bf16.mxu0 0
      %809 = vmatpush1.bf16.msra.mxu0 0
      %810 = vmatprep.subr.bf16.mxu0 0
      %811 = vmatpush1.bf16.msra.mxu0 0
      %812 = vmatprep.subr.bf16.mxu0 0
      %813 = vmatpush1.bf16.msra.mxu0 0
      %814 = vmatprep.subr.bf16.mxu0 0
      %815 = vmatpush1.bf16.msra.mxu0 0
      %816 = vmatprep.subr.bf16.mxu0 0
      %817 = vmatpush1.bf16.msra.mxu0 0
      %818 = vmatprep.subr.bf16.mxu0 0
      %819 = vmatpush1.bf16.msra.mxu0 0
      %820 = vmatprep.subr.bf16.mxu0 0
      %821 = vmatpush1.bf16.msra.mxu0 0
      %822 = vmatprep.subr.bf16.mxu0 0
      %823 = vmatpush1.bf16.msra.mxu0 0
      %824 = vmatprep.subr.bf16.mxu0 0
      %825 = vmatpush1.bf16.msra.mxu0 0
      %826 = vmatprep.subr.bf16.mxu0 0
      %827 = vmatpush1.bf16.msra.mxu0 0
      %828 = vmatprep.subr.bf16.mxu0 0
      %829 = vmatpush1.bf16.msra.mxu0 0
      %830 = vmatprep.subr.bf16.mxu0 0
      %831 = vmatpush1.bf16.msra.mxu0 0
      %832 = vmatprep.subr.bf16.mxu0 0
      %833 = vmatpush1.bf16.msra.mxu0 0
      %834 = vmatprep.subr.bf16.mxu0 0
      %835 = vmatpush1.bf16.msra.mxu0 0
      %836 = vmatprep.mubr.bf16.mxu0 0
      %837 = vmatmul.mubr.bf16.gmra.mrb[0].mxu0 %v412
      %v838 = vpop.f32.mrb[0].mxu0
      %v839 = vadd.f32 %v384, %v838
      %v840 = vpop.f32.mrb[0].mxu0
      %v841 = vpop.f32.mrb[0].mxu0
      %v842 = vadd.f32 %v389, %v841
      %v843 = vpop.f32.mrb[0].mxu0
      %844 = vmatprep.mubr.bf16.mxu0 0
      %845 = vmatmul.mubr.bf16.gmra.mrb[0].mxu0 %v415
      %v846 = vpop.f32.mrb[0].mxu0
      %v847 = vadd.f32 %v394, %v846
      %v848 = vpop.f32.mrb[0].mxu0
      %v849 = vpop.f32.mrb[0].mxu0
      %v850 = vadd.f32 %v399, %v849
      %v851 = vpop.f32.mrb[0].mxu0
      %852 = vdwg.mxu0
      %v853 = vmax.f32 %v839, 0.0
      %v854 = vmax.f32 %v842, 0.0
      %v855 = vmax.f32 %v847, 0.0
      %v856 = vmax.f32 %v850, 0.0
      %v857 = vmax.f32 %v728, %v853
      %v858 = vmax.f32 %v729, %v854
      %v859 = vmax.f32 %v730, %v855
      %v860 = vmax.f32 %v731, %v856
      %vm861 = vcmask 64512
      %862 = vst.msk [vmem:[%s255] sm:$0xff] %vm861, %v857
      %863 = vst.msk [vmem:[%s255 + $0x8] sm:$0xff] %vm861, %v858
      %864 = vst.msk [vmem:[%s255 + $0x10] sm:$0xff] %vm861, %v859
      %865 = vst.msk [vmem:[%s255 + $0x18] sm:$0xff] %vm861, %v860
      %p866 = scmp.lt.s32.totalorder %s20, 1
      %s867 = scalar_select %p866, %s20, 1
      %p868 = scmp.lt.s32.totalorder %s21, 0
      %s869 = scalar_select %p868, %s21, 0
      %s870 = smul.addr %s867, 4
      %s871 = sadd.s32 %s869, %s870
      %s872 = smul.addr %s871, 8
      %s873 = scalar_lea.vmem %s5, %s872
      // Predicated region
      $region41: #{transition_down.1} parent=39 // pred_check
        %p874 = pneg %p160
      $region42: #{transition_down.1} parent=39 // pred_check_branch
        %876 = sbr.rel (%p874) target = $region44
      $region43: #{transition_down.1} parent=39 // pred_region
        _
      $region44: #{transition_down.1} parent=39 // pred_fallthru
        _
    $region40: #{transition_down.1} parent=5 // pred_fallthru
      _
    %p877 = scmp.le.s32.totalorder 2, %s11
    // Predicated region
    $region45: #{transition_down.1} parent=5 // pred_check
      %p878 = pneg %p877
    $region46: #{transition_down.1} parent=5 // pred_check_branch
      %880 = sbr.rel (%p878) target = $region48
    $region47: #{transition_down.1} parent=5 // pred_region
      %s881 = ssub.s32 %s11, 2
      // Predicated region
      $region49: #{transition_down.1} parent=47 // pred_check
        %p882 = pneg %p166
      $region50: #{transition_down.1} parent=47 // pred_check_branch
        %884 = sbr.rel (%p882) target = $region52
      $region51: #{transition_down.1} parent=47 // pred_region
        %p885 = scmp.lt.s32.totalorder %s22, 1
        %s886 = scalar_select %p885, %s22, 1
        %p887 = scmp.lt.s32.totalorder %s23, 0
        %s888 = scalar_select %p887, %s23, 0
        %s889 = smul.addr %s886, 4
        %s890 = sadd.s32 %s888, %s889
        %s891 = smul.addr %s890, 8
        %s892 = scalar_lea.vmem %s5, %s891
      $region52: #{transition_down.1} parent=47 // pred_fallthru
        _
    $region48: #{transition_down.1} parent=5 // pred_fallthru
      _
  $region6: #{transition_down.1} parent=0 // loop_footer
    %s15 = sadd.s32 1, %s11
  $region7: #{transition_down.1} parent=0 // loop_footer_branch
    %10 = sbr.rel target = $region3
  $region8: #{transition_down.1} parent=0 // loop_exit
    _

</llo_original>
